<compile_context>
chip_gen: v6e
topology: v6e:2x2x1
jax: 0.10.0
libtpu: 0.0.40
codegen_flags: <defaults>
</compile_context>

<pallas_src>
import functools

import jax
import jax.numpy as jnp
from jax.experimental import pallas as pl
from jax.experimental.pallas import tpu as pltpu


def _round_up(x, m):
    return (x + m - 1) // m * m


def _make_supcon_kernel(*, has_pmask, tm, tn, n_anchor, n_contrast, inv_temp, scale):
    """Build the tiled SupCon kernel.

    Refs (label path):  alab(tm,1), clab(1,tn), anchor(tm,D), contrast(tn,D),
                        out(tm,1), scratch m/l/ps/pc (tm,1)
    Refs (mask path):   pmask(tm,tn), anchor(tm,D), contrast(tn,D), out, scratch...
    """

    def kernel(*refs):
        if has_pmask:
            (pmask_ref, a_ref, c_ref, out_ref, m_sc, l_sc, ps_sc, pc_sc) = refs
            alab_ref = clab_ref = None
        else:
            (alab_ref, clab_ref, a_ref, c_ref, out_ref,
             m_sc, l_sc, ps_sc, pc_sc) = refs
            pmask_ref = None

        i = pl.program_id(0)
        j = pl.program_id(1)
        nj = pl.num_programs(1)

        @pl.when(j == 0)
        def _init():
            m_sc[...] = jnp.full(m_sc.shape, -jnp.inf, jnp.float32)
            l_sc[...] = jnp.zeros(l_sc.shape, jnp.float32)
            ps_sc[...] = jnp.zeros(ps_sc.shape, jnp.float32)
            pc_sc[...] = jnp.zeros(pc_sc.shape, jnp.float32)

        # logits tile: (anchor block) @ (contrast block).T / T   (MXU, f32 acc)
        s = jax.lax.dot_general(
            a_ref[...], c_ref[...], (((1,), (1,)), ((), ())),
            preferred_element_type=jnp.float32) * inv_temp          # (tm, tn)

        row = i * tm + jax.lax.broadcasted_iota(jnp.int32, (tm, tn), 0)
        col = j * tn + jax.lax.broadcasted_iota(jnp.int32, (tm, tn), 1)
        valid_col = col < n_contrast                                # drop padded cols
        lmask = jnp.logical_and(valid_col, row != col).astype(jnp.float32)

        # ---- online logsumexp over valid, non-self columns -----------------
        s_for_max = jnp.where(valid_col, s, -jnp.inf)
        m_old = m_sc[...]
        m_new = jnp.maximum(m_old, jnp.max(s_for_max, axis=1, keepdims=True))
        alpha = jnp.exp(m_old - m_new)
        p = jnp.exp(s - m_new) * lmask
        l_sc[...] = alpha * l_sc[...] + jnp.sum(p, axis=1, keepdims=True)
        m_sc[...] = m_new

        # ---- positive-pair accumulators (raw logits -> no rescale needed) --
        if has_pmask:
            pmask = pmask_ref[...].astype(jnp.float32) * lmask
        else:
            pmask = (alab_ref[...] == clab_ref[...]).astype(jnp.float32) * lmask
        ps_sc[...] += jnp.sum(pmask * s, axis=1, keepdims=True)
        pc_sc[...] += jnp.sum(pmask, axis=1, keepdims=True)

        @pl.when(j == nj - 1)
        def _finalize():
            m = m_sc[...]
            l = l_sc[...]
            ps = ps_sc[...]
            pc = pc_sc[...]
            # sum(mask*log_prob) = sum(mask*s) - sum(mask)*(m + log(l + 1e-6))
            mean_log_prob_pos = (ps - pc * (m + jnp.log(l + 1e-6))) / (pc + 1e-6)
            row_ids = i * tm + jax.lax.broadcasted_iota(jnp.int32, (tm, 1), 0)
            valid_row = (row_ids < n_anchor).astype(jnp.float32)
            out_ref[...] = (-scale) * mean_log_prob_pos * valid_row

    return kernel


def supcon_loss(features, labels=None, mask=None, *, temperature=0.07,
                contrast_mode='all', base_temperature=0.07,
                block_m=None, block_n=None):
    """Pallas implementation of SupConLoss.forward.

    features: [bsz, n_views, ...] (extra dims flattened).
    labels:   optional [bsz] int labels.
    mask:     optional [bsz, bsz] float positive-pair mask.
    Returns a scalar float32 loss.
    """
    if features.ndim < 3:
        raise ValueError('`features` needs to be [bsz, n_views, ...]')
    if features.ndim > 3:
        features = features.reshape(features.shape[0], features.shape[1], -1)

    bsz, n_views, feat_dim = features.shape
    if labels is not None and mask is not None:
        raise ValueError('Cannot define both `labels` and `mask`')

    contrast_count = n_views
    # torch.cat(torch.unbind(features, 1), 0) == view-major stack (single reshape)
    contrast_feature = jnp.transpose(features, (1, 0, 2)).reshape(
        n_views * bsz, feat_dim)

    if contrast_mode == 'one':
        anchor_feature = features[:, 0, :]
        anchor_count = 1
    elif contrast_mode == 'all':
        anchor_feature = contrast_feature
        anchor_count = contrast_count
    else:
        raise ValueError(f'Unknown mode: {contrast_mode}')

    n_anchor = bsz * anchor_count
    n_contrast = bsz * contrast_count

    # ---- tile selection: 256-aligned for v6e/v7x MXU; shrink for tiny problems ----
    tn = block_n or (256 if n_contrast >= 256 else _round_up(n_contrast, 128))
    tm = block_m or (256 if n_anchor >= 256 else _round_up(n_anchor, 8))
    d_pad = _round_up(feat_dim, 128)
    na_pad = _round_up(n_anchor, tm)
    nc_pad = _round_up(n_contrast, tn)

    def pad2(x, r, c):
        return jnp.pad(x, ((0, r - x.shape[0]), (0, c - x.shape[1])))

    anchor_p = pad2(anchor_feature, na_pad, d_pad)     # keeps original dtype
    contrast_p = pad2(contrast_feature, nc_pad, d_pad)

    grid = (na_pad // tm, nc_pad // tn)
    feat_specs = [
        pl.BlockSpec((tm, d_pad), lambda i, j: (i, 0)),   # anchor rows (held over j)
        pl.BlockSpec((tn, d_pad), lambda i, j: (j, 0)),   # contrast cols (streamed)
    ]

    if mask is not None:
        # TODO(synk): arbitrary user-supplied masks are still streamed as (tm,tn)
        # tiles; the labels / SimCLR paths below need no O(N^2) mask HBM traffic.
        mask_full = jnp.tile(mask.astype(jnp.float32),
                             (anchor_count, contrast_count))
        mask_full = pad2(mask_full, na_pad, nc_pad)
        in_specs = [pl.BlockSpec((tm, tn), lambda i, j: (i, j))] + feat_specs
        args = (mask_full, anchor_p, contrast_p)
        has_pmask = True
    else:
        if labels is None:
            labels = jnp.arange(bsz, dtype=jnp.int32)     # SimCLR: mask == eye(bsz)
        labels = labels.reshape(-1).astype(jnp.int32)
        if labels.shape[0] != bsz:
            raise ValueError('Num of labels does not match num of features')
        clab = jnp.tile(labels, contrast_count)           # [n_contrast]
        alab = clab if contrast_mode == 'all' else labels  # [n_anchor]
        # Padded entries never matter: padded cols are killed by lmask, padded rows
        # by valid_row, so the pad value is arbitrary.
        alab_col = jnp.pad(alab, (0, na_pad - n_anchor),
                           constant_values=-1).reshape(na_pad, 1)
        clab_row = jnp.pad(clab, (0, nc_pad - n_contrast),
                           constant_values=-1).reshape(1, nc_pad)
        in_specs = [
            pl.BlockSpec((tm, 1), lambda i, j: (i, 0)),   # anchor labels (column)
            pl.BlockSpec((1, tn), lambda i, j: (0, j)),   # contrast labels (row)
        ] + feat_specs
        args = (alab_col, clab_row, anchor_p, contrast_p)
        has_pmask = False

    kernel = _make_supcon_kernel(
        has_pmask=has_pmask, tm=tm, tn=tn,
        n_anchor=n_anchor, n_contrast=n_contrast,
        inv_temp=1.0 / temperature,
        scale=temperature / base_temperature)

    per_row = pl.pallas_call(
        kernel,
        grid=grid,
        in_specs=in_specs,
        out_specs=pl.BlockSpec((tm, 1), lambda i, j: (i, 0)),
        out_shape=jax.ShapeDtypeStruct((na_pad, 1), jnp.float32),
        scratch_shapes=[pltpu.VMEM((tm, 1), jnp.float32) for _ in range(4)],
        compiler_params=pltpu.CompilerParams(
            dimension_semantics=("parallel", "arbitrary")),
    )(*args)

    # loss.view(anchor_count, batch_size).mean() == mean over all real anchor rows
    return jnp.sum(per_row) / n_anchor


def _supcon_loss_ref(features, labels=None, mask=None, *, temperature=0.07,
                     contrast_mode='all', base_temperature=0.07):
    """Pure-JAX reference mirroring the PyTorch module (for correctness checks)."""
    bsz, n_views, d = features.shape
    if labels is None and mask is None:
        mask = jnp.eye(bsz, dtype=jnp.float32)
    elif labels is not None:
        labels = labels.reshape(-1, 1)
        mask = (labels == labels.T).astype(jnp.float32)
    else:
        mask = mask.astype(jnp.float32)
    contrast_count = n_views
    contrast_feature = jnp.transpose(features, (1, 0, 2)).reshape(n_views * bsz, d)
    if contrast_mode == 'one':
        anchor_feature = features[:, 0]
        anchor_count = 1
    else:
        anchor_feature = contrast_feature
        anchor_count = contrast_count
    logits = anchor_feature @ contrast_feature.T / temperature
    logits = logits - jnp.max(logits, axis=1, keepdims=True)
    mask = jnp.tile(mask, (anchor_count, contrast_count))
    n_a = bsz * anchor_count
    logits_mask = jnp.ones_like(mask).at[jnp.arange(n_a), jnp.arange(n_a)].set(0.0)
    mask = mask * logits_mask
    exp_logits = jnp.exp(logits) * logits_mask
    log_prob = logits - jnp.log(exp_logits.sum(1, keepdims=True) + 1e-6)
    mean_log_prob_pos = (mask * log_prob).sum(1) / (mask.sum(1) + 1e-6)
    loss = -(temperature / base_temperature) * mean_log_prob_pos
    return loss.mean()


if __name__ == "__main__":
    key = jax.random.PRNGKey(0)
    k1, k2, k3 = jax.random.split(key, 3)

    bsz, n_views, feat_dim = 8, 2, 32
    features = jax.random.normal(k1, (bsz, n_views, feat_dim), jnp.float32)
    features = features / jnp.linalg.norm(features, axis=-1, keepdims=True)
    labels = jax.random.randint(k2, (bsz,), 0, 4)

    # supervised, 'all' mode
    out = jax.block_until_ready(supcon_loss(features, labels=labels))
    ref = _supcon_loss_ref(features, labels=labels)
    assert jnp.allclose(out, ref, rtol=1e-4, atol=1e-4), (out, ref)

    # unsupervised (SimCLR) path: mask = eye(bsz)
    out_u = jax.block_until_ready(supcon_loss(features))
    ref_u = _supcon_loss_ref(features)
    assert jnp.allclose(out_u, ref_u, rtol=1e-4, atol=1e-4), (out_u, ref_u)

    # 'one' contrast mode
    out_o = jax.block_until_ready(
        supcon_loss(features, labels=labels, contrast_mode='one'))
    ref_o = _supcon_loss_ref(features, labels=labels, contrast_mode='one')
    assert jnp.allclose(out_o, ref_o, rtol=1e-4, atol=1e-4), (out_o, ref_o)

    # explicit user mask path
    mask_ex = (jax.random.uniform(k3, (bsz, bsz)) > 0.5).astype(jnp.float32)
    out_m = jax.block_until_ready(supcon_loss(features, mask=mask_ex))
    ref_m = _supcon_loss_ref(features, mask=mask_ex)
    assert jnp.allclose(out_m, ref_m, rtol=1e-4, atol=1e-4), (out_m, ref_m)

    # multi-block grid: exercises row padding, column padding, and the online
    # logsumexp across several contrast blocks.
    bsz2 = 80
    f2 = jax.random.normal(k3, (bsz2, n_views, feat_dim), jnp.float32)
    f2 = f2 / jnp.linalg.norm(f2, axis=-1, keepdims=True)
    l2 = jax.random.randint(k2, (bsz2,), 0, 7)
    out2 = jax.block_until_ready(
        supcon_loss(f2, labels=l2, block_m=64, block_n=128))
    ref2 = _supcon_loss_ref(f2, labels=l2)
    assert jnp.allclose(out2, ref2, rtol=1e-4, atol=1e-4), (out2, ref2)

    print("KERNEL_OK")
</pallas_src>

<mosaic_0001>
module attributes {stable_mosaic.version = 11 : i64} {
  func.func @kernel(%arg0: i32, %arg1: i32, %arg2: memref<16x1xi32, #tpu.memory_space<vmem>>, %arg3: memref<1x128xi32, #tpu.memory_space<vmem>>, %arg4: memref<16x128xf32, #tpu.memory_space<vmem>>, %arg5: memref<128x128xf32, #tpu.memory_space<vmem>>, %arg6: memref<16x1xf32, #tpu.memory_space<vmem>>, %arg7: memref<16x1xf32, #tpu.memory_space<vmem>>, %arg8: memref<16x1xf32, #tpu.memory_space<vmem>>, %arg9: memref<16x1xf32, #tpu.memory_space<vmem>>, %arg10: memref<16x1xf32, #tpu.memory_space<vmem>>) attributes {dimension_semantics = [#tpu.dimension_semantics<parallel>, #tpu.dimension_semantics<arbitrary>], iteration_bounds = array<i64: 1, 1>, scalar_prefetch = 0 : i64, scratch_operands = 4 : i64, tpu.core_type = #tpu.core_type<tc>, window_params = [{transform_indices = @transform_0, window_bounds = array<i64: 16, 1>}, {transform_indices = @transform_1, window_bounds = array<i64: 1, 128>}, {transform_indices = @transform_2, window_bounds = array<i64: 16, 128>}, {transform_indices = @transform_3, window_bounds = array<i64: 128, 128>}, {transform_indices = @transform_4, window_bounds = array<i64: 16, 1>}]} {
    %c0_i32 = arith.constant 0 : i32
    %0 = arith.cmpi eq, %arg1, %c0_i32 : i32
    %1 = arith.extui %0 : i1 to i32
    %c0_i32_0 = arith.constant 0 : i32
    %2 = arith.cmpi ne, %1, %c0_i32_0 : i32
    scf.if %2 {
      %cst_33 = arith.constant 0xFF800000 : f32
      %63 = vector.broadcast %cst_33 : f32 to vector<16x1xf32>
      %c0_34 = arith.constant 0 : index
      %c0_35 = arith.constant 0 : index
      %64 = vector.load %arg7[%c0_34, %c0_35] : memref<16x1xf32, #tpu.memory_space<vmem>>, vector<16x1xf32>
      tpu.vector_store %arg7[%c0_34, %c0_35], %63 {strides = array<i32>} : memref<16x1xf32, #tpu.memory_space<vmem>>, vector<16x1xf32>,
      %cst_36 = arith.constant 0.000000e+00 : f32
      %65 = vector.broadcast %cst_36 : f32 to vector<16x1xf32>
      %c0_37 = arith.constant 0 : index
      %c0_38 = arith.constant 0 : index
      %66 = vector.load %arg8[%c0_37, %c0_38] : memref<16x1xf32, #tpu.memory_space<vmem>>, vector<16x1xf32>
      tpu.vector_store %arg8[%c0_37, %c0_38], %65 {strides = array<i32>} : memref<16x1xf32, #tpu.memory_space<vmem>>, vector<16x1xf32>,
      %cst_39 = arith.constant 0.000000e+00 : f32
      %67 = vector.broadcast %cst_39 : f32 to vector<16x1xf32>
      %c0_40 = arith.constant 0 : index
      %c0_41 = arith.constant 0 : index
      %68 = vector.load %arg9[%c0_40, %c0_41] : memref<16x1xf32, #tpu.memory_space<vmem>>, vector<16x1xf32>
      tpu.vector_store %arg9[%c0_40, %c0_41], %67 {strides = array<i32>} : memref<16x1xf32, #tpu.memory_space<vmem>>, vector<16x1xf32>,
      %cst_42 = arith.constant 0.000000e+00 : f32
      %69 = vector.broadcast %cst_42 : f32 to vector<16x1xf32>
      %c0_43 = arith.constant 0 : index
      %c0_44 = arith.constant 0 : index
      %70 = vector.load %arg10[%c0_43, %c0_44] : memref<16x1xf32, #tpu.memory_space<vmem>>, vector<16x1xf32>
      tpu.vector_store %arg10[%c0_43, %c0_44], %69 {strides = array<i32>} : memref<16x1xf32, #tpu.memory_space<vmem>>, vector<16x1xf32>,
    } else {
    }
    %c0 = arith.constant 0 : index
    %c0_1 = arith.constant 0 : index
    %3 = vector.load %arg4[%c0, %c0_1] : memref<16x128xf32, #tpu.memory_space<vmem>>, vector<16x128xf32>
    %c0_2 = arith.constant 0 : index
    %c0_3 = arith.constant 0 : index
    %4 = vector.load %arg5[%c0_2, %c0_3] : memref<128x128xf32, #tpu.memory_space<vmem>>, vector<128x128xf32>
    %cst = arith.constant dense<0.000000e+00> : vector<16x128xf32>
    %5 = tpu.matmul %3, %4, %cst {dimension_numbers = #tpu.dot_dimension_numbers<[1], [1], [0], [0], [0, 0, 1, 0], [], []>} : vector<16x128xf32>, vector<128x128xf32>, vector<16x128xf32> -> vector<16x128xf32>
    %cst_4 = arith.constant 14.2857141 : f32
    %6 = vector.broadcast %cst_4 : f32 to vector<16x128xf32>
    %7 = arith.mulf %5, %6 : vector<16x128xf32>
    %c16_i32 = arith.constant 16 : i32
    %8 = arith.muli %arg0, %c16_i32 : i32
    %9 = tpu.iota {dimensions = array<i32: 0>} : vector<16x128xi32>
    %10 = vector.broadcast %8 : i32 to vector<16x128xi32>
    %11 = arith.addi %10, %9 : vector<16x128xi32>
    %c128_i32 = arith.constant 128 : i32
    %12 = arith.muli %arg1, %c128_i32 : i32
    %13 = tpu.iota {dimensions = array<i32: 1>} : vector<16x128xi32>
    %14 = vector.broadcast %12 : i32 to vector<16x128xi32>
    %15 = arith.addi %14, %13 : vector<16x128xi32>
    %c16_i32_5 = arith.constant 16 : i32
    %16 = vector.broadcast %c16_i32_5 : i32 to vector<16x128xi32>
    %17 = arith.cmpi slt, %15, %16 : vector<16x128xi32>
    %18 = arith.cmpi ne, %11, %15 : vector<16x128xi32>
    %19 = arith.andi %17, %18 : vector<16x128xi1>
    %20 = arith.extui %19 : vector<16x128xi1> to vector<16x128xi32>
    %21 = arith.sitofp %20 : vector<16x128xi32> to vector<16x128xf32>
    %cst_6 = arith.constant 0xFF800000 : f32
    %22 = vector.broadcast %cst_6 : f32 to vector<16x128xf32>
    %23 = arith.select %17, %7, %22 : vector<16x128xi1>, vector<16x128xf32>
    %c0_7 = arith.constant 0 : index
    %c0_8 = arith.constant 0 : index
    %24 = vector.load %arg7[%c0_7, %c0_8] : memref<16x1xf32, #tpu.memory_space<vmem>>, vector<16x1xf32>
    %cst_9 = arith.constant dense<0xFF800000> : vector<16xf32>
    %25 = vector.multi_reduction <maximumf>, %23, %cst_9 [1] : vector<16x128xf32> to vector<16xf32>
    %26 = vector.shape_cast %25 : vector<16xf32> to vector<16x1xf32>
    %27 = arith.maximumf %24, %26 : vector<16x1xf32>
    %28 = arith.subf %24, %27 : vector<16x1xf32>
    %29 = math.exp %28 : vector<16x1xf32>
    %30 = vector.broadcast %27 : vector<16x1xf32> to vector<16x128xf32>
    %31 = arith.subf %7, %30 : vector<16x128xf32>
    %32 = math.exp %31 : vector<16x128xf32>
    %33 = arith.mulf %32, %21 : vector<16x128xf32>
    %c0_10 = arith.constant 0 : index
    %c0_11 = arith.constant 0 : index
    %34 = vector.load %arg8[%c0_10, %c0_11] : memref<16x1xf32, #tpu.memory_space<vmem>>, vector<16x1xf32>
    %35 = arith.mulf %29, %34 : vector<16x1xf32>
    %cst_12 = arith.constant dense<0.000000e+00> : vector<16xf32>
    %36 = vector.multi_reduction <add>, %33, %cst_12 [1] : vector<16x128xf32> to vector<16xf32>
    %37 = vector.shape_cast %36 : vector<16xf32> to vector<16x1xf32>
    %38 = arith.addf %35, %37 : vector<16x1xf32>
    %c0_13 = arith.constant 0 : index
    %c0_14 = arith.constant 0 : index
    %39 = vector.load %arg8[%c0_13, %c0_14] : memref<16x1xf32, #tpu.memory_space<vmem>>, vector<16x1xf32>
    tpu.vector_store %arg8[%c0_13, %c0_14], %38 {strides = array<i32>} : memref<16x1xf32, #tpu.memory_space<vmem>>, vector<16x1xf32>,
    %c0_15 = arith.constant 0 : index
    %c0_16 = arith.constant 0 : index
    %40 = vector.load %arg7[%c0_15, %c0_16] : memref<16x1xf32, #tpu.memory_space<vmem>>, vector<16x1xf32>
    tpu.vector_store %arg7[%c0_15, %c0_16], %27 {strides = array<i32>} : memref<16x1xf32, #tpu.memory_space<vmem>>, vector<16x1xf32>,
    %c0_17 = arith.constant 0 : index
    %c0_18 = arith.constant 0 : index
    %41 = vector.load %arg2[%c0_17, %c0_18] : memref<16x1xi32, #tpu.memory_space<vmem>>, vector<16x1xi32>
    %c0_19 = arith.constant 0 : index
    %c0_20 = arith.constant 0 : index
    %42 = vector.load %arg3[%c0_19, %c0_20] : memref<1x128xi32, #tpu.memory_space<vmem>>, vector<1x128xi32>
    %43 = vector.broadcast %41 : vector<16x1xi32> to vector<16x128xi32>
    %44 = vector.broadcast %42 : vector<1x128xi32> to vector<16x128xi32>
    %45 = arith.cmpi eq, %43, %44 : vector<16x128xi32>
    %46 = arith.extui %45 : vector<16x128xi1> to vector<16x128xi32>
    %47 = arith.sitofp %46 : vector<16x128xi32> to vector<16x128xf32>
    %48 = arith.mulf %47, %21 : vector<16x128xf32>
    %c0_21 = arith.constant 0 : index
    %c0_22 = arith.constant 0 : index
    %49 = vector.load %arg9[%c0_21, %c0_22] : memref<16x1xf32, #tpu.memory_space<vmem>>, vector<16x1xf32>
    %50 = arith.mulf %48, %7 : vector<16x128xf32>
    %cst_23 = arith.constant dense<0.000000e+00> : vector<16xf32>
    %51 = vector.multi_reduction <add>, %50, %cst_23 [1] : vector<16x128xf32> to vector<16xf32>
    %52 = vector.shape_cast %51 : vector<16xf32> to vector<16x1xf32>
    %53 = arith.addf %49, %52 : vector<16x1xf32>
    %c0_24 = arith.constant 0 : index
    %c0_25 = arith.constant 0 : index
    %54 = vector.load %arg9[%c0_24, %c0_25] : memref<16x1xf32, #tpu.memory_space<vmem>>, vector<16x1xf32>
    tpu.vector_store %arg9[%c0_24, %c0_25], %53 {strides = array<i32>} : memref<16x1xf32, #tpu.memory_space<vmem>>, vector<16x1xf32>,
    %c0_26 = arith.constant 0 : index
    %c0_27 = arith.constant 0 : index
    %55 = vector.load %arg10[%c0_26, %c0_27] : memref<16x1xf32, #tpu.memory_space<vmem>>, vector<16x1xf32>
    %cst_28 = arith.constant dense<0.000000e+00> : vector<16xf32>
    %56 = vector.multi_reduction <add>, %48, %cst_28 [1] : vector<16x128xf32> to vector<16xf32>
    %57 = vector.shape_cast %56 : vector<16xf32> to vector<16x1xf32>
    %58 = arith.addf %55, %57 : vector<16x1xf32>
    %c0_29 = arith.constant 0 : index
    %c0_30 = arith.constant 0 : index
    %59 = vector.load %arg10[%c0_29, %c0_30] : memref<16x1xf32, #tpu.memory_space<vmem>>, vector<16x1xf32>
    tpu.vector_store %arg10[%c0_29, %c0_30], %58 {strides = array<i32>} : memref<16x1xf32, #tpu.memory_space<vmem>>, vector<16x1xf32>,
    %c0_i32_31 = arith.constant 0 : i32
    %60 = arith.cmpi eq, %arg1, %c0_i32_31 : i32
    %61 = arith.extui %60 : i1 to i32
    %c0_i32_32 = arith.constant 0 : i32
    %62 = arith.cmpi ne, %61, %c0_i32_32 : i32
    scf.if %62 {
      %c0_33 = arith.constant 0 : index
      %c0_34 = arith.constant 0 : index
      %63 = vector.load %arg7[%c0_33, %c0_34] : memref<16x1xf32, #tpu.memory_space<vmem>>, vector<16x1xf32>
      %c0_35 = arith.constant 0 : index
      %c0_36 = arith.constant 0 : index
      %64 = vector.load %arg8[%c0_35, %c0_36] : memref<16x1xf32, #tpu.memory_space<vmem>>, vector<16x1xf32>
      %c0_37 = arith.constant 0 : index
      %c0_38 = arith.constant 0 : index
      %65 = vector.load %arg9[%c0_37, %c0_38] : memref<16x1xf32, #tpu.memory_space<vmem>>, vector<16x1xf32>
      %c0_39 = arith.constant 0 : index
      %c0_40 = arith.constant 0 : index
      %66 = vector.load %arg10[%c0_39, %c0_40] : memref<16x1xf32, #tpu.memory_space<vmem>>, vector<16x1xf32>
      %cst_41 = arith.constant 9.99999997E-7 : f32
      %67 = vector.broadcast %cst_41 : f32 to vector<16x1xf32>
      %68 = arith.addf %64, %67 : vector<16x1xf32>
      %69 = math.log %68 : vector<16x1xf32>
      %70 = arith.addf %63, %69 : vector<16x1xf32>
      %71 = arith.mulf %66, %70 : vector<16x1xf32>
      %72 = arith.subf %65, %71 : vector<16x1xf32>
      %cst_42 = arith.constant 9.99999997E-7 : f32
      %73 = vector.broadcast %cst_42 : f32 to vector<16x1xf32>
      %74 = arith.addf %66, %73 : vector<16x1xf32>
      %75 = arith.divf %72, %74 : vector<16x1xf32>
      %c16_i32_43 = arith.constant 16 : i32
      %76 = arith.muli %arg0, %c16_i32_43 : i32
      %77 = tpu.iota {dimensions = array<i32: 0>} : vector<16x1xi32>
      %78 = vector.broadcast %76 : i32 to vector<16x1xi32>
      %79 = arith.addi %78, %77 : vector<16x1xi32>
      %c16_i32_44 = arith.constant 16 : i32
      %80 = vector.broadcast %c16_i32_44 : i32 to vector<16x1xi32>
      %81 = arith.cmpi slt, %79, %80 : vector<16x1xi32>
      %82 = arith.extui %81 : vector<16x1xi1> to vector<16x1xi32>
      %83 = arith.sitofp %82 : vector<16x1xi32> to vector<16x1xf32>
      %cst_45 = arith.constant -1.000000e+00 : f32
      %84 = vector.broadcast %cst_45 : f32 to vector<16x1xf32>
      %85 = arith.mulf %84, %75 : vector<16x1xf32>
      %86 = arith.mulf %85, %83 : vector<16x1xf32>
      %c0_46 = arith.constant 0 : index
      %c0_47 = arith.constant 0 : index
      %87 = vector.load %arg6[%c0_46, %c0_47] : memref<16x1xf32, #tpu.memory_space<vmem>>, vector<16x1xf32>
      tpu.vector_store %arg6[%c0_46, %c0_47], %86 {strides = array<i32>} : memref<16x1xf32, #tpu.memory_space<vmem>>, vector<16x1xf32>,
    } else {
    }
    return
  }
  func.func @transform_0(%arg0: i32, %arg1: i32) -> (i32, i32) {
    %c0_i32 = arith.constant 0 : i32
    %c0_i32_0 = arith.constant 0 : i32
    return %arg0, %c0_i32 : i32, i32
  }
  func.func @transform_1(%arg0: i32, %arg1: i32) -> (i32, i32) {
    %c0_i32 = arith.constant 0 : i32
    %c0_i32_0 = arith.constant 0 : i32
    return %c0_i32, %arg1 : i32, i32
  }
  func.func @transform_2(%arg0: i32, %arg1: i32) -> (i32, i32) {
    %c0_i32 = arith.constant 0 : i32
    %c0_i32_0 = arith.constant 0 : i32
    return %arg0, %c0_i32 : i32, i32
  }
  func.func @transform_3(%arg0: i32, %arg1: i32) -> (i32, i32) {
    %c0_i32 = arith.constant 0 : i32
    %c0_i32_0 = arith.constant 0 : i32
    return %arg1, %c0_i32 : i32, i32
  }
  func.func @transform_4(%arg0: i32, %arg1: i32) -> (i32, i32) {
    %c0_i32 = arith.constant 0 : i32
    %c0_i32_0 = arith.constant 0 : i32
    return %arg0, %c0_i32 : i32, i32
  }
}

</mosaic_0001>

<llo_original>
// kernel: tpu_custom_call.1
$region0: #{tpu_custom_call.1}
  #allocation0 [shape = 'u32[]', space=smem, size = 0x4, offset = 0x4, fixed_abs, tag = 'smem constant byte address 0x4 - core index']
  #allocation1 [shape = 'u32[144,128]{1,0:T(1,128)}', space=vmem, size = 0x12000, scoped, tag = 'internal scratch']
  #allocation2 [shape = 'f32[16,1]{1,0:T(8,128)}', space=vmem, size = 0x2000, scoped, tag = 'scratch operand']
  #allocation3 [shape = 'f32[16,1]{1,0:T(8,128)}', space=vmem, size = 0x2000, scoped, tag = 'scratch operand']
  #allocation4 [shape = 'f32[16,1]{1,0:T(8,128)}', space=vmem, size = 0x2000, scoped, tag = 'scratch operand']
  #allocation5 [shape = 'f32[16,1]{1,0:T(8,128)}', space=vmem, size = 0x2000, scoped, tag = 'scratch operand']
  %s0 = inlined_call_operand.vmem [shape: s32[16,1], index: 0, kind: input, shape index: {}]
  %s1 = inlined_call_operand.vmem [shape: s32[1,128], index: 1, kind: input, shape index: {}]
  %s2 = inlined_call_operand.vmem [shape: f32[16,128], index: 2, kind: input, shape index: {}]
  %s3 = inlined_call_operand.hbm [shape: f32[128,128], index: 3, kind: input, shape index: {}]
  %s4 = inlined_call_operand.vmem [shape: f32[16,1], index: 4, kind: output, shape index: {}]
  %s5 = sld [smem:[#allocation0]]
  $region38: #{tpu_custom_call.1} parent=0
    _
  %s7 = ssub.s32 1, %s5
  %s8 = scalar_select 0, %s7, %s5
  $region1: #{tpu_custom_call.1} parent=0
    #allocation6 [shape = 'u8[65536]{0}', space=vmem, size = 0x10000, scoped, tag = 'input window, operand 3, single buffered']
    #allocation7 [shape = 's32[1]{0}', space=sflag, size = 0x4, scoped, tag = 'scoped memory for tpu_custom_call.1']
    %9 = vsyncpa [#allocation7], 0
    // Predicated region
    $region2: #{tpu_custom_call.1} parent=1 // pred_check
      _
    $region3: #{tpu_custom_call.1} parent=1 // pred_check_branch
      %11 = sbr.rel (0) target = $region5
    $region4: #{tpu_custom_call.1} parent=1 // pred_region
      _
    $region5: #{tpu_custom_call.1} parent=1 // pred_fallthru
      _
    // Predicated region
    $region6: #{tpu_custom_call.1} parent=1 // pred_check
      _
    $region7: #{tpu_custom_call.1} parent=1 // pred_check_branch
      %13 = sbr.rel (0) target = $region9
    $region8: #{tpu_custom_call.1} parent=1 // pred_region
      _
    $region9: #{tpu_custom_call.1} parent=1 // pred_fallthru
      _
    // Predicated region
    $region10: #{tpu_custom_call.1} parent=1 // pred_check
      _
    $region11: #{tpu_custom_call.1} parent=1 // pred_check_branch
      %15 = sbr.rel (0) target = $region13
    $region12: #{tpu_custom_call.1} parent=1 // pred_region
      _
    $region13: #{tpu_custom_call.1} parent=1 // pred_fallthru
      _
    // Predicated region
    $region14: #{tpu_custom_call.1} parent=1 // pred_check
      _
    $region15: #{tpu_custom_call.1} parent=1 // pred_check_branch
      %17 = sbr.rel (0) target = $region17
    $region16: #{tpu_custom_call.1} parent=1 // pred_region
      %s19 = ssub.s32 2048, 2048
      %20 = vsyncadd [#allocation7], %s19
      %s21 = sshll.u32 [#allocation6], 4
      %s22 = int_to_ptr.vmem [resolvable:$true] %s21
      %27 = dma.hbm_to_vmem [thread:$0]  %s3, 2048, %s22, [#allocation7], 128, 128, 8
    $region17: #{tpu_custom_call.1} parent=1 // pred_fallthru
      _
    // Predicated region
    $region18: #{tpu_custom_call.1} parent=1 // pred_check
      _
    $region19: #{tpu_custom_call.1} parent=1 // pred_check_branch
      %29 = sbr.rel (0) target = $region21
    $region20: #{tpu_custom_call.1} parent=1 // pred_region
      %30 = dma.done [#allocation7], 2048
    $region21: #{tpu_custom_call.1} parent=1 // pred_fallthru
      _
    %p31 = scmp.eq.s32.totalorder 0, 0
    // Predicated region
    $region22: #{tpu_custom_call.1} parent=1 // pred_check
      %p32 = pneg %p31
    $region23: #{tpu_custom_call.1} parent=1 // pred_check_branch
      %34 = sbr.rel (%p32) target = $region25
    $region24: #{tpu_custom_call.1} parent=1 // pred_region
      %vm35 = vcmask 7168
      %36 = vst.msk [vmem:[#allocation2] sm:$0xff] %vm35, -inf
      %37 = vst.msk [vmem:[#allocation2 + $0x8] sm:$0xff] %vm35, -inf
      %38 = vst.msk [vmem:[#allocation3] sm:$0xff] %vm35, 0.0
      %39 = vst.msk [vmem:[#allocation3 + $0x8] sm:$0xff] %vm35, 0.0
      %40 = vst.msk [vmem:[#allocation4] sm:$0xff] %vm35, 0.0
      %41 = vst.msk [vmem:[#allocation4 + $0x8] sm:$0xff] %vm35, 0.0
      %42 = vst.msk [vmem:[#allocation5] sm:$0xff] %vm35, 0.0
      %43 = vst.msk [vmem:[#allocation5 + $0x8] sm:$0xff] %vm35, 0.0
    $region25: #{tpu_custom_call.1} parent=1 // pred_fallthru
      _
    %v44 = vld [vmem:[%s2] sm:$0xff]
    %v45 = vld [vmem:[%s2 + $0x8] sm:$0xff]
    %v46 = vld [vmem:[#allocation6] sm:$0xff]
    %v47 = vld [vmem:[#allocation6 + $0x8] sm:$0xff]
    %v48 = vld [vmem:[#allocation6 + $0x10] sm:$0xff]
    %v49 = vld [vmem:[#allocation6 + $0x18] sm:$0xff]
    %v50 = vld [vmem:[#allocation6 + $0x20] sm:$0xff]
    %v51 = vld [vmem:[#allocation6 + $0x28] sm:$0xff]
    %v52 = vld [vmem:[#allocation6 + $0x30] sm:$0xff]
    %v53 = vld [vmem:[#allocation6 + $0x38] sm:$0xff]
    %v54 = vld [vmem:[#allocation6 + $0x40] sm:$0xff]
    %v55 = vld [vmem:[#allocation6 + $0x48] sm:$0xff]
    %v56 = vld [vmem:[#allocation6 + $0x50] sm:$0xff]
    %v57 = vld [vmem:[#allocation6 + $0x58] sm:$0xff]
    %v58 = vld [vmem:[#allocation6 + $0x60] sm:$0xff]
    %v59 = vld [vmem:[#allocation6 + $0x68] sm:$0xff]
    %v60 = vld [vmem:[#allocation6 + $0x70] sm:$0xff]
    %v61 = vld [vmem:[#allocation6 + $0x78] sm:$0xff]
    %62 = vmatprep.subr.mxu0 0.0
    %63 = vmatpush1.xpose.msra.mxu0 %v61
    %64 = vmatprep.subr.mxu0 0.0
    %65 = vmatpush1.xpose.msra.mxu0 %v60
    %66 = vmatprep.subr.mxu0 0.0
    %67 = vmatpush1.xpose.msra.mxu0 %v59
    %68 = vmatprep.subr.mxu0 0.0
    %69 = vmatpush1.xpose.msra.mxu0 %v58
    %70 = vmatprep.subr.mxu0 0.0
    %71 = vmatpush1.xpose.msra.mxu0 %v57
    %72 = vmatprep.subr.mxu0 0.0
    %73 = vmatpush1.xpose.msra.mxu0 %v56
    %74 = vmatprep.subr.mxu0 0.0
    %75 = vmatpush1.xpose.msra.mxu0 %v55
    %76 = vmatprep.subr.mxu0 0.0
    %77 = vmatpush1.xpose.msra.mxu0 %v54
    %78 = vmatprep.subr.mxu0 0.0
    %79 = vmatpush1.xpose.msra.mxu0 %v53
    %80 = vmatprep.subr.mxu0 0.0
    %81 = vmatpush1.xpose.msra.mxu0 %v52
    %82 = vmatprep.subr.mxu0 0.0
    %83 = vmatpush1.xpose.msra.mxu0 %v51
    %84 = vmatprep.subr.mxu0 0.0
    %85 = vmatpush1.xpose.msra.mxu0 %v50
    %86 = vmatprep.subr.mxu0 0.0
    %87 = vmatpush1.xpose.msra.mxu0 %v49
    %88 = vmatprep.subr.mxu0 0.0
    %89 = vmatpush1.xpose.msra.mxu0 %v48
    %90 = vmatprep.subr.mxu0 0.0
    %91 = vmatpush1.xpose.msra.mxu0 %v47
    %92 = vmatprep.subr.mxu0 0.0
    %93 = vmatpush1.xpose.msra.mxu0 %v46
    %94 = vmatprep.subr.mxu0 0.0
    %95 = vmatpush2.xpose.msra.mxu0 0.0
    %96 = vmatprep.subr.mxu0 0.0
    %97 = vmatpush2.xpose.msra.mxu0 0.0
    %98 = vmatprep.subr.mxu0 0.0
    %99 = vmatpush2.xpose.msra.mxu0 0.0
    %100 = vmatprep.subr.mxu0 0.0
    %101 = vmatpush2.xpose.msra.mxu0 0.0
    %102 = vmatprep.subr.mxu0 0.0
    %103 = vmatpush2.xpose.msra.mxu0 0.0
    %104 = vmatprep.subr.mxu0 0.0
    %105 = vmatpush2.xpose.msra.mxu0 0.0
    %106 = vmatprep.subr.mxu0 0.0
    %107 = vmatpush2.xpose.msra.mxu0 0.0
    %108 = vmatprep.subr.mxu0 0.0
    %109 = vmatpush2.xpose.msra.mxu0 0.0
    %110 = vmatprep.subr.mxu0 0.0
    %111 = vmatpush2.xpose.msra.mxu0 0.0
    %112 = vmatprep.subr.mxu0 0.0
    %113 = vmatpush2.xpose.msra.mxu0 0.0
    %114 = vmatprep.subr.mxu0 0.0
    %115 = vmatpush2.xpose.msra.mxu0 0.0
    %116 = vmatprep.subr.mxu0 0.0
    %117 = vmatpush2.xpose.msra.mxu0 0.0
    %118 = vmatprep.subr.mxu0 0.0
    %119 = vmatpush2.xpose.msra.mxu0 0.0
    %120 = vmatprep.subr.mxu0 0.0
    %121 = vmatpush2.xpose.msra.mxu0 0.0
    %122 = vmatprep.subr.mxu0 0.0
    %123 = vmatpush2.xpose.msra.mxu0 0.0
    %124 = vmatprep.subr.mxu0 0.0
    %125 = vmatpush2.xpose.msra.mxu0 0.0
    %126 = vmatprep.mubr.f32.mxu0 0.0
    %127 = vmatmul.mubr.f32.gmra.mxu0 %v44
    %v128 = vpop.f32.mrf.mxu0
    %v129 = vadd.f32 0.0, %v128
    %v130 = vpop.f32.mrf.mxu0
    %131 = vmatprep.mubr.f32.mxu0 0.0
    %132 = vmatmul.mubr.f32.gmra.mxu0 %v45
    %v133 = vpop.f32.mrf.mxu0
    %v134 = vadd.f32 0.0, %v133
    %v135 = vpop.f32.mrf.mxu0
    %136 = vdwg.mxu0
    %v137 = vmul.f32 %v129, 14.285714
    %v138 = vmul.f32 %v134, 14.285714
    %s139 = smul.u32 0, 16
    %v140 = vlaneseq
    %v141 = vshrl.u32 %v140, 7
    %v142 = vadd.s32 %v141, 8
    %v143 = vstv %s139
    %v144 = vadd.s32 %v143, %v141
    %v145 = vadd.s32 %v143, %v142
    %s146 = smul.u32 0, 128
    %v147 = vlaneseq
    %v148 = vand.u32 %v147, 127
    %v149 = vstv %s146
    %v150 = vadd.s32 %v149, %v148
    %vm151 = vcmp.lt.s32.totalorder %v150, 16
    %vm152 = vcmp.ne.s32.totalorder %v144, %v150
    %vm153 = vcmp.ne.s32.totalorder %v145, %v150
    %vm154 = vmand %vm151, %vm152
    %vm155 = vmand %vm151, %vm153
    %v156 = vsel %vm154, 1, 0
    %v157 = vsel %vm155, 1, 0
    %v158 = vcvt.s32.f32 %v156
    %v159 = vcvt.s32.f32 %v157
    %v160 = vsel %vm151, %v137, -inf
    %v161 = vsel %vm151, %v138, -inf
    %v162 = vld [vmem:[#allocation2] sm:$0xff]
    %v163 = vld [vmem:[#allocation2 + $0x8] sm:$0xff]
    %164 = vmax.xlane.f32.xlu0 %v160
    %v165 = vpop.xlane.xlu0 %164
    %166 = vmax.xlane.f32.xlu0 %v161
    %v167 = vpop.xlane.xlu0 %166
    %v168 = vmax.f32 %v162, %v165
    %v169 = vmax.f32 %v163, %v167
    %v170 = vsub.f32 %v162, %v168
    %v171 = vsub.f32 %v163, %v169
    %v172 = vmul.f32 %v170, 1.442695
    %v173 = vpow.pop %v172
    %v174 = vmul.f32 %v171, 1.442695
    %v175 = vpow.pop %v174
    %177 = vset.pattern.permute.xlu0 0
    %178 = vperm.xlu0 %177, %v168
    %v179 = vpop.permute.xlu0 %178
    %182 = vset.pattern.permute.xlu0 0
    %183 = vperm.xlu0 %182, %v169
    %v184 = vpop.permute.xlu0 %183
    %v186 = vsub.f32 %v137, %v179
    %v187 = vsub.f32 %v138, %v184
    %v188 = vmul.f32 %v186, 1.442695
    %v189 = vpow.pop %v188
    %v190 = vmul.f32 %v187, 1.442695
    %v191 = vpow.pop %v190
    %v192 = vmul.f32 %v189, %v158
    %v193 = vmul.f32 %v191, %v159
    %v194 = vld [vmem:[#allocation3] sm:$0xff]
    %v195 = vld [vmem:[#allocation3 + $0x8] sm:$0xff]
    %v196 = vmul.f32 %v173, %v194
    %v197 = vmul.f32 %v175, %v195
    %198 = vadd.xlane.f32.xlu0 %v192
    %v199 = vpop.xlane.xlu0 %198
    %200 = vadd.xlane.f32.xlu0 %v193
    %v201 = vpop.xlane.xlu0 %200
    %v202 = vadd.f32 %v196, %v199
    %v203 = vadd.f32 %v197, %v201
    %vm204 = vcmask 7168
    %205 = vst.msk [vmem:[#allocation3] sm:$0xff] %vm204, %v202
    %206 = vst.msk [vmem:[#allocation3 + $0x8] sm:$0xff] %vm204, %v203
    %207 = vst.msk [vmem:[#allocation2] sm:$0xff] %vm204, %v168
    %208 = vst.msk [vmem:[#allocation2 + $0x8] sm:$0xff] %vm204, %v169
    %v209 = vld [vmem:[%s0] sm:$0xff]
    %v210 = vld [vmem:[%s0 + $0x8] sm:$0xff]
    %v211 = vld [vmem:[%s1] sm:$0x1]
    %212 = vset.pattern.permute.xlu0 0
    %213 = vperm.xlu0 %212, %v209
    %v214 = vpop.permute.xlu0 %213
    %215 = vset.pattern.permute.xlu0 0
    %216 = vperm.xlu0 %215, %v210
    %v217 = vpop.permute.xlu0 %216
    %v218 = vlaneseq
    %v219 = vshrl.u32 %v218, 7
    %v220 = vsub.s32 0, %v219
    %v221 = vrot.slane %v211, %v220
    %vm222 = vcmp.eq.s32.totalorder %v214, %v221
    %vm223 = vcmp.eq.s32.totalorder %v217, %v221
    %v224 = vsel %vm222, 1, 0
    %v225 = vsel %vm223, 1, 0
    %v226 = vcvt.s32.f32 %v224
    %v227 = vcvt.s32.f32 %v225
    %v228 = vmul.f32 %v226, %v158
    %v229 = vmul.f32 %v227, %v159
    %v230 = vld [vmem:[#allocation4] sm:$0xff]
    %v231 = vld [vmem:[#allocation4 + $0x8] sm:$0xff]
    %v232 = vmul.f32 %v228, %v137
    %v233 = vmul.f32 %v229, %v138
    %234 = vadd.xlane.f32.xlu0 %v232
    %v235 = vpop.xlane.xlu0 %234
    %236 = vadd.xlane.f32.xlu0 %v233
    %v237 = vpop.xlane.xlu0 %236
    %v238 = vadd.f32 %v230, %v235
    %v239 = vadd.f32 %v231, %v237
    %240 = vst.msk [vmem:[#allocation4] sm:$0xff] %vm204, %v238
    %241 = vst.msk [vmem:[#allocation4 + $0x8] sm:$0xff] %vm204, %v239
    %v242 = vld [vmem:[#allocation5] sm:$0xff]
    %v243 = vld [vmem:[#allocation5 + $0x8] sm:$0xff]
    %244 = vadd.xlane.f32.xlu0 %v228
    %v245 = vpop.xlane.xlu0 %244
    %246 = vadd.xlane.f32.xlu0 %v229
    %v247 = vpop.xlane.xlu0 %246
    %v248 = vadd.f32 %v242, %v245
    %v249 = vadd.f32 %v243, %v247
    %250 = vst.msk [vmem:[#allocation5] sm:$0xff] %vm204, %v248
    %251 = vst.msk [vmem:[#allocation5 + $0x8] sm:$0xff] %vm204, %v249
    // Predicated region
    $region26: #{tpu_custom_call.1} parent=1 // pred_check
      %p252 = pneg %p31
    $region27: #{tpu_custom_call.1} parent=1 // pred_check_branch
      %254 = sbr.rel (%p252) target = $region29
    $region28: #{tpu_custom_call.1} parent=1 // pred_region
      %v255 = vld [vmem:[#allocation2] sm:$0xff]
      %v256 = vld [vmem:[#allocation2 + $0x8] sm:$0xff]
      %v257 = vld [vmem:[#allocation3] sm:$0xff]
      %v258 = vld [vmem:[#allocation3 + $0x8] sm:$0xff]
      %v259 = vld [vmem:[#allocation4] sm:$0xff]
      %v260 = vld [vmem:[#allocation4 + $0x8] sm:$0xff]
      %v261 = vld [vmem:[#allocation5] sm:$0xff]
      %v262 = vld [vmem:[#allocation5 + $0x8] sm:$0xff]
      %v263 = vadd.f32 %v257, 1e-06
      %v264 = vadd.f32 %v258, 1e-06
      %v265 = vlog2.pop %v263
      %v266 = vmul.f32 %v265, 0.6931472
      %v267 = vlog2.pop %v264
      %v268 = vmul.f32 %v267, 0.6931472
      %v269 = vadd.f32 %v255, %v266
      %v270 = vadd.f32 %v256, %v268
      %v271 = vmul.f32 %v261, %v269
      %v272 = vmul.f32 %v262, %v270
      %v273 = vsub.f32 %v259, %v271
      %v274 = vsub.f32 %v260, %v272
      %v275 = vadd.f32 %v261, 1e-06
      %v276 = vadd.f32 %v262, 1e-06
      %v277 = vrcp.pop %v275
      %v278 = vmul.f32 %v273, %v277
      %v279 = vrcp.pop %v276
      %v280 = vmul.f32 %v274, %v279
      %vm281 = vcmp.lt.s32.totalorder %v144, 16
      %vm282 = vcmp.lt.s32.totalorder %v145, 16
      %v283 = vsel %vm281, 1, 0
      %v284 = vsel %vm282, 1, 0
      %v285 = vcvt.s32.f32 %v283
      %v286 = vcvt.s32.f32 %v284
      %v287 = vmul.f32 %v278, -1.0
      %v288 = vmul.f32 %v280, -1.0
      %v289 = vmul.f32 %v287, %v285
      %v290 = vmul.f32 %v288, %v286
      %291 = vst.msk [vmem:[%s4] sm:$0xff] %vm204, %v289
      %292 = vst.msk [vmem:[%s4 + $0x8] sm:$0xff] %vm204, %v290
    $region29: #{tpu_custom_call.1} parent=1 // pred_fallthru
      _
    // Predicated region
    $region30: #{tpu_custom_call.1} parent=1 // pred_check
      _
    $region31: #{tpu_custom_call.1} parent=1 // pred_check_branch
      %294 = sbr.rel (0) target = $region33
    $region32: #{tpu_custom_call.1} parent=1 // pred_region
      _
    $region33: #{tpu_custom_call.1} parent=1 // pred_fallthru
      _
    // Predicated region
    $region34: #{tpu_custom_call.1} parent=1 // pred_check
      _
    $region35: #{tpu_custom_call.1} parent=1 // pred_check_branch
      %296 = sbr.rel (0) target = $region37
    $region36: #{tpu_custom_call.1} parent=1 // pred_region
      _
    $region37: #{tpu_custom_call.1} parent=1 // pred_fallthru
      _
    %297 = vsyncpa [#allocation7], 1

</llo_original>
